<compile_context>
chip_gen: v5e
topology: v5e:2x2
jax: 0.10.0
libtpu: 0.0.40
codegen_flags: <defaults>
</compile_context>

<pallas_src>
import jax
import jax.numpy as jnp
from jax import lax
from jax.experimental import pallas as pl
from jax.experimental.pallas import tpu as pltpu

BN_EPS = 1e-5
LANE = 128


def _round_up(n, m):
    return ((n + m - 1) // m) * m


def _bn_relu(h, gamma, beta):
    """Training-mode BatchNorm1d (+ReLU) applied as per-feature scale/shift.

    All statistics / elementwise math stays in f32 (v5e has no bf16 VPU/EUP)."""
    mean = jnp.mean(h, axis=0, keepdims=True)
    centered = h - mean
    var = jnp.mean(centered * centered, axis=0, keepdims=True)  # biased var
    scale = gamma * lax.rsqrt(var + BN_EPS)        # (1, F); rsqrt -> EUP slot
    shift = beta - mean * scale                    # (1, F)
    return jnp.maximum(h * scale + shift, 0.0)     # 2 VPU ops / element


def net_kernel(x_ref, w1_ref, w2_ref, w3_ref, wo_ref, vec_ref, out_ref):
    h1p = w1_ref.shape[1]
    h2p = w2_ref.shape[1]
    h3p = w3_ref.shape[1]

    # Packed per-feature vectors (f32): row 0 = b1, 1 = gamma2, 2 = beta2,
    # 3 = gamma3, 4 = beta3 (each zero-padded to the packed width).
    b1 = vec_ref[0:1, :h1p]
    g2 = vec_ref[1:2, :h2p]
    be2 = vec_ref[2:3, :h2p]
    g3 = vec_ref[3:4, :h3p]
    be3 = vec_ref[4:5, :h3p]

    mm_dtype = w1_ref.dtype  # bf16 (or f32) matmul operands, f32 accumulation

    # fc1 -> relu   (bias kept: no BatchNorm follows it)
    # x arrives as f32; cast to the matmul dtype here (not in the wrapper).
    x = x_ref[...].astype(mm_dtype)
    h1 = jnp.dot(x, w1_ref[...], preferred_element_type=jnp.float32)
    h1 = jnp.maximum(h1 + b1, 0.0)

    # fc2 -> bn2 -> relu  (fc2 bias dropped: cancelled by BN mean subtraction)
    h2 = jnp.dot(h1.astype(mm_dtype), w2_ref[...],
                 preferred_element_type=jnp.float32)
    h2 = _bn_relu(h2, g2, be2)

    # fc3 -> bn3 -> relu  (fc3 bias dropped: cancelled by BN mean subtraction)
    h3 = jnp.dot(h2.astype(mm_dtype), w3_ref[...],
                 preferred_element_type=jnp.float32)
    h3 = _bn_relu(h3, g3, be3)

    # fco (no bias) -> relu.  wo is only K-padded; the output is the exact
    # (batch, n_output) array, stored directly (no wrapper slice).
    y = jnp.dot(h3.astype(mm_dtype), wo_ref[...],
                preferred_element_type=jnp.float32)
    out_ref[...] = jnp.maximum(y, 0.0).astype(out_ref.dtype)


def prepare_params(params, matmul_dtype=jnp.bfloat16):
    """One-time layout prep: pad hidden feature dims to multiples of 128, pack
    the small per-feature vectors into one array, cast weights to the matmul
    dtype.  fco's output dim is left unpadded so the kernel writes the exact
    (batch, n_output) result.

    fc2/fc3 biases are dropped here (exactly cancelled by the training-mode
    BatchNorms that follow them).  Padded weight columns and BN params are
    exactly zero, so padded activation columns are exactly 0 and contribute
    nothing to downstream matmuls."""
    (w1, b1, w2, _b2, g2, be2, w3, _b3, g3, be3, wo) = params

    n_in, h1 = w1.shape
    h2 = w2.shape[1]
    h3 = w3.shape[1]
    n_out = wo.shape[1]
    h1p, h2p, h3p = (_round_up(d, LANE) for d in (h1, h2, h3))

    def pad_to(a, rows, cols):
        return jnp.pad(a, ((0, rows - a.shape[0]), (0, cols - a.shape[1])))

    w1p = pad_to(w1, n_in, h1p).astype(matmul_dtype)
    w2p = pad_to(w2, h1p, h2p).astype(matmul_dtype)
    w3p = pad_to(w3, h2p, h3p).astype(matmul_dtype)
    wop = pad_to(wo, h3p, n_out).astype(matmul_dtype)   # K-padded only

    hmax = max(h1p, h2p, h3p)
    vec = jnp.zeros((5, hmax), jnp.float32)
    vec = vec.at[0, :h1].set(b1[0])
    vec = vec.at[1, :h2].set(g2[0])
    vec = vec.at[2, :h2].set(be2[0])
    vec = vec.at[3, :h3].set(g3[0])
    vec = vec.at[4, :h3].set(be3[0])

    return (w1p, w2p, w3p, wop, vec)


@jax.jit
def net_forward(x, prepared):
    w1p, w2p, w3p, wop, vec = prepared
    batch = x.shape[0]
    n_out = wop.shape[1]
    mm_itemsize = jnp.dtype(w1p.dtype).itemsize

    # --- scheduler hint, consistent with the actual I/O dtypes/shapes --------
    flops = 2 * batch * (w1p.shape[0] * w1p.shape[1]
                         + w2p.shape[0] * w2p.shape[1]
                         + w3p.shape[0] * w3p.shape[1]
                         + wop.shape[0] * wop.shape[1])
    weight_bytes = sum(int(w.size) * mm_itemsize for w in (w1p, w2p, w3p, wop))
    bytes_accessed = (batch * x.shape[1] * 4          # x stays f32 in HBM
                      + weight_bytes
                      + int(vec.size) * 4
                      + batch * n_out * 4)            # exact (unpadded) output
    cost = pl.CostEstimate(flops=flops,
                           transcendentals=w2p.shape[1] + w3p.shape[1],  # rsqrt
                           bytes_accessed=bytes_accessed)

    # --- VMEM budget derived from the actual resident footprint --------------
    # Buffers (inputs/outputs in VMEM) + f32 intermediate activations, with a
    # 2x margin for compiler scratch / casts, floored at 8 MiB.
    act_bytes = batch * (w1p.shape[1] + w2p.shape[1] + w3p.shape[1]) * 4
    footprint = (batch * x.shape[1] * 4 + weight_bytes + int(vec.size) * 4
                 + batch * n_out * 4 + act_bytes)
    vmem_limit = max(2 * footprint, 8 * 1024 * 1024)

    vmem_spec = pl.BlockSpec(memory_space=pltpu.MemorySpace.VMEM)
    out = pl.pallas_call(
        net_kernel,
        out_shape=jax.ShapeDtypeStruct((batch, n_out), jnp.float32),
        in_specs=[vmem_spec] * 6,
        out_specs=vmem_spec,
        cost_estimate=cost,
        compiler_params=pltpu.CompilerParams(vmem_limit_bytes=vmem_limit),
    )(x, w1p, w2p, w3p, wop, vec)

    return out


# ----------------------------- pure-JAX reference ----------------------------

def _bn_ref(h, gamma, beta):
    mean = jnp.mean(h, axis=0, keepdims=True)
    var = jnp.mean((h - mean) * (h - mean), axis=0, keepdims=True)
    return (h - mean) * lax.rsqrt(var + BN_EPS) * gamma + beta


def net_reference(x, params, matmul_dtype=jnp.float32):
    """Original (unpadded, biased) semantics of Net.forward."""
    (w1, b1, w2, b2, g2, be2, w3, b3, g3, be3, wo) = params

    def mm(a, w):
        return jnp.dot(a.astype(matmul_dtype), w.astype(matmul_dtype),
                       preferred_element_type=jnp.float32)

    h1 = jnp.maximum(mm(x, w1) + b1, 0.0)
    h2 = jnp.maximum(_bn_ref(mm(h1, w2) + b2, g2, be2), 0.0)
    h3 = jnp.maximum(_bn_ref(mm(h2, w3) + b3, g3, be3), 0.0)
    return jnp.maximum(mm(h3, wo), 0.0)


def init_params(key, n_input, n_hidden1, n_hidden2, n_hidden3, n_output):
    ks = jax.random.split(key, 8)

    def linear(kw, kb, fan_in, fan_out, bias=True):
        bound = 1.0 / jnp.sqrt(fan_in)
        w = jax.random.uniform(kw, (fan_in, fan_out), jnp.float32, -bound, bound)
        if not bias:
            return w, None
        b = jax.random.uniform(kb, (1, fan_out), jnp.float32, -bound, bound)
        return w, b

    w1, b1 = linear(ks[0], ks[1], n_input, n_hidden1)
    w2, b2 = linear(ks[2], ks[3], n_hidden1, n_hidden2)
    w3, b3 = linear(ks[4], ks[5], n_hidden2, n_hidden3)
    wo, _ = linear(ks[6], ks[7], n_hidden3, n_output, bias=False)

    # BatchNorm affine params (PyTorch default init: gamma=1, beta=0).
    g2 = jnp.ones((1, n_hidden2), jnp.float32)
    be2 = jnp.zeros((1, n_hidden2), jnp.float32)
    g3 = jnp.ones((1, n_hidden3), jnp.float32)
    be3 = jnp.zeros((1, n_hidden3), jnp.float32)

    return (w1, b1, w2, b2, g2, be2, w3, b3, g3, be3, wo)


if __name__ == "__main__":
    n_input, n_hidden1, n_hidden2, n_hidden3, n_output = 32, 64, 64, 32, 16
    batch = 256  # multiple of 128 (v5e MXU rows) and 256 (v6e/v7x MXU rows)

    key = jax.random.PRNGKey(0)
    kx, kp = jax.random.split(key)
    x = jax.random.normal(kx, (batch, n_input), jnp.float32)
    params = init_params(kp, n_input, n_hidden1, n_hidden2, n_hidden3, n_output)

    # --- exact-semantics check: f32 matmul operands --------------------------
    prep_f32 = prepare_params(params, matmul_dtype=jnp.float32)
    out_f32 = jax.block_until_ready(net_forward(x, prep_f32))
    ref_f32 = jax.block_until_ready(net_reference(x, params, jnp.float32))
    assert out_f32.shape == (batch, n_output)
    assert jnp.allclose(out_f32, ref_f32, atol=1e-3, rtol=1e-3), \
        "f32 kernel mismatch vs reference"

    # --- bf16 matmul path (full-rate MXU on v5e/v6e/v7x, half the weight DMA) -
    prep_bf16 = prepare_params(params, matmul_dtype=jnp.bfloat16)
    out_bf16 = jax.block_until_ready(net_forward(x, prep_bf16))
    assert out_bf16.shape == (batch, n_output)
    max_err = float(jnp.max(jnp.abs(out_bf16 - ref_f32)))
    assert max_err < 1e-1, f"bf16 kernel drifted too far from f32 ref: {max_err}"

    print("KERNEL_OK")
</pallas_src>

<mosaic_0001>
module attributes {stable_mosaic.version = 11 : i64} {
  func.func @net_kernel(%arg0: memref<256x32xf32, #tpu.memory_space<vmem>>, %arg1: memref<32x128xf32, #tpu.memory_space<vmem>>, %arg2: memref<128x128xf32, #tpu.memory_space<vmem>>, %arg3: memref<128x128xf32, #tpu.memory_space<vmem>>, %arg4: memref<128x16xf32, #tpu.memory_space<vmem>>, %arg5: memref<5x128xf32, #tpu.memory_space<vmem>>, %arg6: memref<256x16xf32, #tpu.memory_space<vmem>>) attributes {dimension_semantics = [], scalar_prefetch = 0 : i64, scratch_operands = 0 : i64, tpu.core_type = #tpu.core_type<tc>} {
    %c0 = arith.constant 0 : index
    %c0_0 = arith.constant 0 : index
    %0 = vector.load %arg5[%c0, %c0_0] : memref<5x128xf32, #tpu.memory_space<vmem>>, vector<1x128xf32>
    %c1 = arith.constant 1 : index
    %c0_1 = arith.constant 0 : index
    %1 = vector.load %arg5[%c1, %c0_1] : memref<5x128xf32, #tpu.memory_space<vmem>>, vector<1x128xf32>
    %c2 = arith.constant 2 : index
    %c0_2 = arith.constant 0 : index
    %2 = vector.load %arg5[%c2, %c0_2] : memref<5x128xf32, #tpu.memory_space<vmem>>, vector<1x128xf32>
    %c3 = arith.constant 3 : index
    %c0_3 = arith.constant 0 : index
    %3 = vector.load %arg5[%c3, %c0_3] : memref<5x128xf32, #tpu.memory_space<vmem>>, vector<1x128xf32>
    %c4 = arith.constant 4 : index
    %c0_4 = arith.constant 0 : index
    %4 = vector.load %arg5[%c4, %c0_4] : memref<5x128xf32, #tpu.memory_space<vmem>>, vector<1x128xf32>
    %c0_5 = arith.constant 0 : index
    %c0_6 = arith.constant 0 : index
    %5 = vector.load %arg0[%c0_5, %c0_6] : memref<256x32xf32, #tpu.memory_space<vmem>>, vector<256x32xf32>
    %c0_7 = arith.constant 0 : index
    %c0_8 = arith.constant 0 : index
    %6 = vector.load %arg1[%c0_7, %c0_8] : memref<32x128xf32, #tpu.memory_space<vmem>>, vector<32x128xf32>
    %cst = arith.constant dense<0.000000e+00> : vector<256x128xf32>
    %7 = tpu.matmul %5, %6, %cst {dimension_numbers = #tpu.dot_dimension_numbers<[1], [0], [0], [1], [0, 0, 1, 1], [], []>} : vector<256x32xf32>, vector<32x128xf32>, vector<256x128xf32> -> vector<256x128xf32>
    %8 = vector.broadcast %0 : vector<1x128xf32> to vector<256x128xf32>
    %9 = arith.addf %7, %8 : vector<256x128xf32>
    %cst_9 = arith.constant 0.000000e+00 : f32
    %10 = vector.broadcast %cst_9 : f32 to vector<256x128xf32>
    %11 = arith.maximumf %9, %10 : vector<256x128xf32>
    %c0_10 = arith.constant 0 : index
    %c0_11 = arith.constant 0 : index
    %12 = vector.load %arg2[%c0_10, %c0_11] : memref<128x128xf32, #tpu.memory_space<vmem>>, vector<128x128xf32>
    %cst_12 = arith.constant dense<0.000000e+00> : vector<256x128xf32>
    %13 = tpu.matmul %11, %12, %cst_12 {dimension_numbers = #tpu.dot_dimension_numbers<[1], [0], [0], [1], [0, 0, 1, 1], [], []>} : vector<256x128xf32>, vector<128x128xf32>, vector<256x128xf32> -> vector<256x128xf32>
    %cst_13 = arith.constant dense<0.000000e+00> : vector<128xf32>
    %14 = vector.multi_reduction <add>, %13, %cst_13 [0] : vector<256x128xf32> to vector<128xf32>
    %15 = vector.shape_cast %14 : vector<128xf32> to vector<1x128xf32>
    %cst_14 = arith.constant 2.560000e+02 : f32
    %16 = vector.broadcast %cst_14 : f32 to vector<1x128xf32>
    %17 = arith.divf %15, %16 : vector<1x128xf32>
    %18 = vector.broadcast %17 : vector<1x128xf32> to vector<256x128xf32>
    %19 = arith.subf %13, %18 : vector<256x128xf32>
    %20 = arith.mulf %19, %19 : vector<256x128xf32>
    %cst_15 = arith.constant dense<0.000000e+00> : vector<128xf32>
    %21 = vector.multi_reduction <add>, %20, %cst_15 [0] : vector<256x128xf32> to vector<128xf32>
    %22 = vector.shape_cast %21 : vector<128xf32> to vector<1x128xf32>
    %cst_16 = arith.constant 2.560000e+02 : f32
    %23 = vector.broadcast %cst_16 : f32 to vector<1x128xf32>
    %24 = arith.divf %22, %23 : vector<1x128xf32>
    %cst_17 = arith.constant 9.99999974E-6 : f32
    %25 = vector.broadcast %cst_17 : f32 to vector<1x128xf32>
    %26 = arith.addf %24, %25 : vector<1x128xf32>
    %27 = math.rsqrt %26 : vector<1x128xf32>
    %28 = arith.mulf %1, %27 : vector<1x128xf32>
    %29 = arith.mulf %17, %28 : vector<1x128xf32>
    %30 = arith.subf %2, %29 : vector<1x128xf32>
    %31 = vector.broadcast %28 : vector<1x128xf32> to vector<256x128xf32>
    %32 = arith.mulf %13, %31 : vector<256x128xf32>
    %33 = vector.broadcast %30 : vector<1x128xf32> to vector<256x128xf32>
    %34 = arith.addf %32, %33 : vector<256x128xf32>
    %cst_18 = arith.constant 0.000000e+00 : f32
    %35 = vector.broadcast %cst_18 : f32 to vector<256x128xf32>
    %36 = arith.maximumf %34, %35 : vector<256x128xf32>
    %c0_19 = arith.constant 0 : index
    %c0_20 = arith.constant 0 : index
    %37 = vector.load %arg3[%c0_19, %c0_20] : memref<128x128xf32, #tpu.memory_space<vmem>>, vector<128x128xf32>
    %cst_21 = arith.constant dense<0.000000e+00> : vector<256x128xf32>
    %38 = tpu.matmul %36, %37, %cst_21 {dimension_numbers = #tpu.dot_dimension_numbers<[1], [0], [0], [1], [0, 0, 1, 1], [], []>} : vector<256x128xf32>, vector<128x128xf32>, vector<256x128xf32> -> vector<256x128xf32>
    %cst_22 = arith.constant dense<0.000000e+00> : vector<128xf32>
    %39 = vector.multi_reduction <add>, %38, %cst_22 [0] : vector<256x128xf32> to vector<128xf32>
    %40 = vector.shape_cast %39 : vector<128xf32> to vector<1x128xf32>
    %cst_23 = arith.constant 2.560000e+02 : f32
    %41 = vector.broadcast %cst_23 : f32 to vector<1x128xf32>
    %42 = arith.divf %40, %41 : vector<1x128xf32>
    %43 = vector.broadcast %42 : vector<1x128xf32> to vector<256x128xf32>
    %44 = arith.subf %38, %43 : vector<256x128xf32>
    %45 = arith.mulf %44, %44 : vector<256x128xf32>
    %cst_24 = arith.constant dense<0.000000e+00> : vector<128xf32>
    %46 = vector.multi_reduction <add>, %45, %cst_24 [0] : vector<256x128xf32> to vector<128xf32>
    %47 = vector.shape_cast %46 : vector<128xf32> to vector<1x128xf32>
    %cst_25 = arith.constant 2.560000e+02 : f32
    %48 = vector.broadcast %cst_25 : f32 to vector<1x128xf32>
    %49 = arith.divf %47, %48 : vector<1x128xf32>
    %cst_26 = arith.constant 9.99999974E-6 : f32
    %50 = vector.broadcast %cst_26 : f32 to vector<1x128xf32>
    %51 = arith.addf %49, %50 : vector<1x128xf32>
    %52 = math.rsqrt %51 : vector<1x128xf32>
    %53 = arith.mulf %3, %52 : vector<1x128xf32>
    %54 = arith.mulf %42, %53 : vector<1x128xf32>
    %55 = arith.subf %4, %54 : vector<1x128xf32>
    %56 = vector.broadcast %53 : vector<1x128xf32> to vector<256x128xf32>
    %57 = arith.mulf %38, %56 : vector<256x128xf32>
    %58 = vector.broadcast %55 : vector<1x128xf32> to vector<256x128xf32>
    %59 = arith.addf %57, %58 : vector<256x128xf32>
    %cst_27 = arith.constant 0.000000e+00 : f32
    %60 = vector.broadcast %cst_27 : f32 to vector<256x128xf32>
    %61 = arith.maximumf %59, %60 : vector<256x128xf32>
    %c0_28 = arith.constant 0 : index
    %c0_29 = arith.constant 0 : index
    %62 = vector.load %arg4[%c0_28, %c0_29] : memref<128x16xf32, #tpu.memory_space<vmem>>, vector<128x16xf32>
    %cst_30 = arith.constant dense<0.000000e+00> : vector<256x16xf32>
    %63 = tpu.matmul %61, %62, %cst_30 {dimension_numbers = #tpu.dot_dimension_numbers<[1], [0], [0], [1], [0, 0, 1, 1], [], []>} : vector<256x128xf32>, vector<128x16xf32>, vector<256x16xf32> -> vector<256x16xf32>
    %cst_31 = arith.constant 0.000000e+00 : f32
    %64 = vector.broadcast %cst_31 : f32 to vector<256x16xf32>
    %65 = arith.maximumf %63, %64 : vector<256x16xf32>
    %c0_32 = arith.constant 0 : index
    %c0_33 = arith.constant 0 : index
    %66 = vector.load %arg6[%c0_32, %c0_33] : memref<256x16xf32, #tpu.memory_space<vmem>>, vector<256x16xf32>
    tpu.vector_store %arg6[%c0_32, %c0_33], %65 {strides = array<i32>} : memref<256x16xf32, #tpu.memory_space<vmem>>, vector<256x16xf32>,
    return
  }
}

</mosaic_0001>

<llo_original>
// kernel: net_forward.1
$region0: #{net_forward.1}
  #allocation0 [shape = 'u32[]', space=smem, size = 0x4, offset = 0x4, fixed_abs, tag = 'smem constant byte address 0x4 - core index']
  #allocation1 [shape = 'u32[72,128]{1,0:T(1,128)}', space=vmem, size = 0x9000, scoped, tag = 'internal scratch']
  %s0 = inlined_call_operand.vmem [shape: f32[256,32], index: 0, kind: input, shape index: {}]
  %s1 = inlined_call_operand.vmem [shape: f32[32,128], index: 1, kind: input, shape index: {}]
  %s2 = inlined_call_operand.vmem [shape: f32[128,128], index: 2, kind: input, shape index: {}]
  %s3 = inlined_call_operand.vmem [shape: f32[128,128], index: 3, kind: input, shape index: {}]
  %s4 = inlined_call_operand.vmem [shape: f32[128,16], index: 4, kind: input, shape index: {}]
  %s5 = inlined_call_operand.vmem [shape: f32[5,128], index: 5, kind: input, shape index: {}]
  %s6 = inlined_call_operand.vmem [shape: f32[256,16], index: 6, kind: output, shape index: {}]
  %s7 = sld [smem:[#allocation0]]
  $region34: #{net_forward.1} parent=0
    _
  %s9 = ssub.s32 1, %s7
  %s10 = scalar_select 0, %s9, %s7
  // Predicated region
  $region2: #{net_forward.1} parent=0 // pred_check
    _
  $region3: #{net_forward.1} parent=0 // pred_check_branch
    %12 = sbr.rel (0) target = $region5
  $region4: #{net_forward.1} parent=0 // pred_region
    _
  $region5: #{net_forward.1} parent=0 // pred_fallthru
    _
  // Predicated region
  $region6: #{net_forward.1} parent=0 // pred_check
    _
  $region7: #{net_forward.1} parent=0 // pred_check_branch
    %14 = sbr.rel (0) target = $region9
  $region8: #{net_forward.1} parent=0 // pred_region
    _
  $region9: #{net_forward.1} parent=0 // pred_fallthru
    _
  // Predicated region
  $region10: #{net_forward.1} parent=0 // pred_check
    _
  $region11: #{net_forward.1} parent=0 // pred_check_branch
    %16 = sbr.rel (0) target = $region13
  $region12: #{net_forward.1} parent=0 // pred_region
    _
  $region13: #{net_forward.1} parent=0 // pred_fallthru
    _
  // Predicated region
  $region14: #{net_forward.1} parent=0 // pred_check
    _
  $region15: #{net_forward.1} parent=0 // pred_check_branch
    %18 = sbr.rel (0) target = $region17
  $region16: #{net_forward.1} parent=0 // pred_region
    _
  $region17: #{net_forward.1} parent=0 // pred_fallthru
    _
  // Predicated region
  $region18: #{net_forward.1} parent=0 // pred_check
    _
  $region19: #{net_forward.1} parent=0 // pred_check_branch
    %20 = sbr.rel (0) target = $region21
  $region20: #{net_forward.1} parent=0 // pred_region
    _
  $region21: #{net_forward.1} parent=0 // pred_fallthru
    _
  // Predicated region
  $region22: #{net_forward.1} parent=0 // pred_check
    _
  $region23: #{net_forward.1} parent=0 // pred_check_branch
    %22 = sbr.rel (0) target = $region25
  $region24: #{net_forward.1} parent=0 // pred_region
    _
  $region25: #{net_forward.1} parent=0 // pred_fallthru
    _
  %v23 = vld [vmem:[%s5] sm:$0x1]
  %v24 = vld [vmem:[%s5 + $0x1] sm:$0x1]
  %v25 = vld [vmem:[%s5 + $0x2] sm:$0x1]
  %v26 = vld [vmem:[%s5 + $0x3] sm:$0x1]
  %v27 = vld [vmem:[%s5 + $0x4] sm:$0x1]
  %v28 = vld [vmem:[%s0] sm:$0xff]
  %v29 = vld [vmem:[%s0 + $0x8] sm:$0xff]
  %v30 = vld [vmem:[%s0 + $0x10] sm:$0xff]
  %v31 = vld [vmem:[%s0 + $0x18] sm:$0xff]
  %v32 = vld [vmem:[%s0 + $0x20] sm:$0xff]
  %v33 = vld [vmem:[%s0 + $0x28] sm:$0xff]
  %v34 = vld [vmem:[%s0 + $0x30] sm:$0xff]
  %v35 = vld [vmem:[%s0 + $0x38] sm:$0xff]
  %v36 = vld [vmem:[%s0 + $0x40] sm:$0xff]
  %v37 = vld [vmem:[%s0 + $0x48] sm:$0xff]
  %v38 = vld [vmem:[%s0 + $0x50] sm:$0xff]
  %v39 = vld [vmem:[%s0 + $0x58] sm:$0xff]
  %v40 = vld [vmem:[%s0 + $0x60] sm:$0xff]
  %v41 = vld [vmem:[%s0 + $0x68] sm:$0xff]
  %v42 = vld [vmem:[%s0 + $0x70] sm:$0xff]
  %v43 = vld [vmem:[%s0 + $0x78] sm:$0xff]
  %v44 = vld [vmem:[%s0 + $0x80] sm:$0xff]
  %v45 = vld [vmem:[%s0 + $0x88] sm:$0xff]
  %v46 = vld [vmem:[%s0 + $0x90] sm:$0xff]
  %v47 = vld [vmem:[%s0 + $0x98] sm:$0xff]
  %v48 = vld [vmem:[%s0 + $0xa0] sm:$0xff]
  %v49 = vld [vmem:[%s0 + $0xa8] sm:$0xff]
  %v50 = vld [vmem:[%s0 + $0xb0] sm:$0xff]
  %v51 = vld [vmem:[%s0 + $0xb8] sm:$0xff]
  %v52 = vld [vmem:[%s0 + $0xc0] sm:$0xff]
  %v53 = vld [vmem:[%s0 + $0xc8] sm:$0xff]
  %v54 = vld [vmem:[%s0 + $0xd0] sm:$0xff]
  %v55 = vld [vmem:[%s0 + $0xd8] sm:$0xff]
  %v56 = vld [vmem:[%s0 + $0xe0] sm:$0xff]
  %v57 = vld [vmem:[%s0 + $0xe8] sm:$0xff]
  %v58 = vld [vmem:[%s0 + $0xf0] sm:$0xff]
  %v59 = vld [vmem:[%s0 + $0xf8] sm:$0xff]
  %v60 = vld [vmem:[%s1] sm:$0xff]
  %v61 = vld [vmem:[%s1 + $0x8] sm:$0xff]
  %v62 = vld [vmem:[%s1 + $0x10] sm:$0xff]
  %v63 = vld [vmem:[%s1 + $0x18] sm:$0xff]
  %v64 = vperm.slane %v23, 0
  %vm65 = vcmask 261120
  %v67 = vsel %vm65, %v28, 0
  %v70 = vsel %vm65, %v29, 0
  %v73 = vsel %vm65, %v30, 0
  %v76 = vsel %vm65, %v31, 0
  %v79 = vsel %vm65, %v32, 0
  %v82 = vsel %vm65, %v33, 0
  %v85 = vsel %vm65, %v34, 0
  %v88 = vsel %vm65, %v35, 0
  %v91 = vsel %vm65, %v36, 0
  %v94 = vsel %vm65, %v37, 0
  %v97 = vsel %vm65, %v38, 0
  %v100 = vsel %vm65, %v39, 0
  %v103 = vsel %vm65, %v40, 0
  %v106 = vsel %vm65, %v41, 0
  %v109 = vsel %vm65, %v42, 0
  %v112 = vsel %vm65, %v43, 0
  %v115 = vsel %vm65, %v44, 0
  %v118 = vsel %vm65, %v45, 0
  %v121 = vsel %vm65, %v46, 0
  %v124 = vsel %vm65, %v47, 0
  %v127 = vsel %vm65, %v48, 0
  %v130 = vsel %vm65, %v49, 0
  %v133 = vsel %vm65, %v50, 0
  %v136 = vsel %vm65, %v51, 0
  %v139 = vsel %vm65, %v52, 0
  %v142 = vsel %vm65, %v53, 0
  %v145 = vsel %vm65, %v54, 0
  %v148 = vsel %vm65, %v55, 0
  %v151 = vsel %vm65, %v56, 0
  %v154 = vsel %vm65, %v57, 0
  %v157 = vsel %vm65, %v58, 0
  %v160 = vsel %vm65, %v59, 0
  %162 = vmatpush.msra.mxu0 0.0
  %163 = vmatpush.msra.mxu0 0.0
  %164 = vmatpush.msra.mxu0 0.0
  %165 = vmatpush.msra.mxu0 0.0
  %166 = vmatpush.msra.mxu0 0.0
  %167 = vmatpush.msra.mxu0 0.0
  %168 = vmatpush.msra.mxu0 0.0
  %169 = vmatpush.msra.mxu0 0.0
  %170 = vmatpush.msra.mxu0 0.0
  %171 = vmatpush.msra.mxu0 0.0
  %172 = vmatpush.msra.mxu0 0.0
  %173 = vmatpush.msra.mxu0 0.0
  %174 = vmatpush.msra.mxu0 %v63
  %175 = vmatpush.msra.mxu0 %v62
  %176 = vmatpush.msra.mxu0 %v61
  %177 = vmatpush.msra.mxu0 %v60
  %178 = vmatmul.f32.gmra.mxu0 %v67
  %v179 = vpop.f32.mrf.mxu0
  %v180 = vadd.f32 %v64, %v179
  %181 = vmatmul.f32.gmra.mxu0 %v70
  %v182 = vpop.f32.mrf.mxu0
  %v183 = vadd.f32 %v64, %v182
  %184 = vmatmul.f32.gmra.mxu0 %v73
  %v185 = vpop.f32.mrf.mxu0
  %v186 = vadd.f32 %v64, %v185
  %187 = vmatmul.f32.gmra.mxu0 %v76
  %v188 = vpop.f32.mrf.mxu0
  %v189 = vadd.f32 %v64, %v188
  %190 = vmatmul.f32.gmra.mxu0 %v79
  %v191 = vpop.f32.mrf.mxu0
  %v192 = vadd.f32 %v64, %v191
  %193 = vmatmul.f32.gmra.mxu0 %v82
  %v194 = vpop.f32.mrf.mxu0
  %v195 = vadd.f32 %v64, %v194
  %196 = vmatmul.f32.gmra.mxu0 %v85
  %v197 = vpop.f32.mrf.mxu0
  %v198 = vadd.f32 %v64, %v197
  %199 = vmatmul.f32.gmra.mxu0 %v88
  %v200 = vpop.f32.mrf.mxu0
  %v201 = vadd.f32 %v64, %v200
  %202 = vmatmul.f32.gmra.mxu0 %v91
  %v203 = vpop.f32.mrf.mxu0
  %v204 = vadd.f32 %v64, %v203
  %205 = vmatmul.f32.gmra.mxu0 %v94
  %v206 = vpop.f32.mrf.mxu0
  %v207 = vadd.f32 %v64, %v206
  %208 = vmatmul.f32.gmra.mxu0 %v97
  %v209 = vpop.f32.mrf.mxu0
  %v210 = vadd.f32 %v64, %v209
  %211 = vmatmul.f32.gmra.mxu0 %v100
  %v212 = vpop.f32.mrf.mxu0
  %v213 = vadd.f32 %v64, %v212
  %214 = vmatmul.f32.gmra.mxu0 %v103
  %v215 = vpop.f32.mrf.mxu0
  %v216 = vadd.f32 %v64, %v215
  %217 = vmatmul.f32.gmra.mxu0 %v106
  %v218 = vpop.f32.mrf.mxu0
  %v219 = vadd.f32 %v64, %v218
  %220 = vmatmul.f32.gmra.mxu0 %v109
  %v221 = vpop.f32.mrf.mxu0
  %v222 = vadd.f32 %v64, %v221
  %223 = vmatmul.f32.gmra.mxu0 %v112
  %v224 = vpop.f32.mrf.mxu0
  %v225 = vadd.f32 %v64, %v224
  %226 = vmatmul.f32.gmra.mxu0 %v115
  %v227 = vpop.f32.mrf.mxu0
  %v228 = vadd.f32 %v64, %v227
  %229 = vmatmul.f32.gmra.mxu0 %v118
  %v230 = vpop.f32.mrf.mxu0
  %v231 = vadd.f32 %v64, %v230
  %232 = vmatmul.f32.gmra.mxu0 %v121
  %v233 = vpop.f32.mrf.mxu0
  %v234 = vadd.f32 %v64, %v233
  %235 = vmatmul.f32.gmra.mxu0 %v124
  %v236 = vpop.f32.mrf.mxu0
  %v237 = vadd.f32 %v64, %v236
  %238 = vmatmul.f32.gmra.mxu0 %v127
  %v239 = vpop.f32.mrf.mxu0
  %v240 = vadd.f32 %v64, %v239
  %241 = vmatmul.f32.gmra.mxu0 %v130
  %v242 = vpop.f32.mrf.mxu0
  %v243 = vadd.f32 %v64, %v242
  %244 = vmatmul.f32.gmra.mxu0 %v133
  %v245 = vpop.f32.mrf.mxu0
  %v246 = vadd.f32 %v64, %v245
  %247 = vmatmul.f32.gmra.mxu0 %v136
  %v248 = vpop.f32.mrf.mxu0
  %v249 = vadd.f32 %v64, %v248
  %250 = vmatmul.f32.gmra.mxu0 %v139
  %v251 = vpop.f32.mrf.mxu0
  %v252 = vadd.f32 %v64, %v251
  %253 = vmatmul.f32.gmra.mxu0 %v142
  %v254 = vpop.f32.mrf.mxu0
  %v255 = vadd.f32 %v64, %v254
  %256 = vmatmul.f32.gmra.mxu0 %v145
  %v257 = vpop.f32.mrf.mxu0
  %v258 = vadd.f32 %v64, %v257
  %259 = vmatmul.f32.gmra.mxu0 %v148
  %v260 = vpop.f32.mrf.mxu0
  %v261 = vadd.f32 %v64, %v260
  %262 = vmatmul.f32.gmra.mxu0 %v151
  %v263 = vpop.f32.mrf.mxu0
  %v264 = vadd.f32 %v64, %v263
  %265 = vmatmul.f32.gmra.mxu0 %v154
  %v266 = vpop.f32.mrf.mxu0
  %v267 = vadd.f32 %v64, %v266
  %268 = vmatmul.f32.gmra.mxu0 %v157
  %v269 = vpop.f32.mrf.mxu0
  %v270 = vadd.f32 %v64, %v269
  %271 = vmatmul.f32.gmra.mxu0 %v160
  %v272 = vpop.f32.mrf.mxu0
  %v273 = vadd.f32 %v64, %v272
  %274 = vdwg.mxu0
  %v275 = vmax.f32 %v180, 0.0
  %v276 = vmax.f32 %v183, 0.0
  %v277 = vmax.f32 %v186, 0.0
  %v278 = vmax.f32 %v189, 0.0
  %v279 = vmax.f32 %v192, 0.0
  %v280 = vmax.f32 %v195, 0.0
  %v281 = vmax.f32 %v198, 0.0
  %v282 = vmax.f32 %v201, 0.0
  %v283 = vmax.f32 %v204, 0.0
  %v284 = vmax.f32 %v207, 0.0
  %v285 = vmax.f32 %v210, 0.0
  %v286 = vmax.f32 %v213, 0.0
  %v287 = vmax.f32 %v216, 0.0
  %v288 = vmax.f32 %v219, 0.0
  %v289 = vmax.f32 %v222, 0.0
  %v290 = vmax.f32 %v225, 0.0
  %v291 = vmax.f32 %v228, 0.0
  %v292 = vmax.f32 %v231, 0.0
  %v293 = vmax.f32 %v234, 0.0
  %v294 = vmax.f32 %v237, 0.0
  %v295 = vmax.f32 %v240, 0.0
  %v296 = vmax.f32 %v243, 0.0
  %v297 = vmax.f32 %v246, 0.0
  %v298 = vmax.f32 %v249, 0.0
  %v299 = vmax.f32 %v252, 0.0
  %v300 = vmax.f32 %v255, 0.0
  %v301 = vmax.f32 %v258, 0.0
  %v302 = vmax.f32 %v261, 0.0
  %v303 = vmax.f32 %v264, 0.0
  %v304 = vmax.f32 %v267, 0.0
  %v305 = vmax.f32 %v270, 0.0
  %v306 = vmax.f32 %v273, 0.0
  %v307 = vld [vmem:[%s2] sm:$0xff]
  %v308 = vld [vmem:[%s2 + $0x8] sm:$0xff]
  %v309 = vld [vmem:[%s2 + $0x10] sm:$0xff]
  %v310 = vld [vmem:[%s2 + $0x18] sm:$0xff]
  %v311 = vld [vmem:[%s2 + $0x20] sm:$0xff]
  %v312 = vld [vmem:[%s2 + $0x28] sm:$0xff]
  %v313 = vld [vmem:[%s2 + $0x30] sm:$0xff]
  %v314 = vld [vmem:[%s2 + $0x38] sm:$0xff]
  %v315 = vld [vmem:[%s2 + $0x40] sm:$0xff]
  %v316 = vld [vmem:[%s2 + $0x48] sm:$0xff]
  %v317 = vld [vmem:[%s2 + $0x50] sm:$0xff]
  %v318 = vld [vmem:[%s2 + $0x58] sm:$0xff]
  %v319 = vld [vmem:[%s2 + $0x60] sm:$0xff]
  %v320 = vld [vmem:[%s2 + $0x68] sm:$0xff]
  %v321 = vld [vmem:[%s2 + $0x70] sm:$0xff]
  %v322 = vld [vmem:[%s2 + $0x78] sm:$0xff]
  %323 = vmatpush.msra.mxu0 %v322
  %324 = vmatpush.msra.mxu0 %v321
  %325 = vmatpush.msra.mxu0 %v320
  %326 = vmatpush.msra.mxu0 %v319
  %327 = vmatpush.msra.mxu0 %v318
  %328 = vmatpush.msra.mxu0 %v317
  %329 = vmatpush.msra.mxu0 %v316
  %330 = vmatpush.msra.mxu0 %v315
  %331 = vmatpush.msra.mxu0 %v314
  %332 = vmatpush.msra.mxu0 %v313
  %333 = vmatpush.msra.mxu0 %v312
  %334 = vmatpush.msra.mxu0 %v311
  %335 = vmatpush.msra.mxu0 %v310
  %336 = vmatpush.msra.mxu0 %v309
  %337 = vmatpush.msra.mxu0 %v308
  %338 = vmatpush.msra.mxu0 %v307
  %339 = vmatmul.f32.gmra.mxu0 %v275
  %v340 = vpop.f32.mrf.mxu0
  %v341 = vadd.f32 0.0, %v340
  %342 = vmatmul.f32.gmra.mxu0 %v276
  %v343 = vpop.f32.mrf.mxu0
  %v344 = vadd.f32 0.0, %v343
  %345 = vmatmul.f32.gmra.mxu0 %v277
  %v346 = vpop.f32.mrf.mxu0
  %v347 = vadd.f32 0.0, %v346
  %348 = vmatmul.f32.gmra.mxu0 %v278
  %v349 = vpop.f32.mrf.mxu0
  %v350 = vadd.f32 0.0, %v349
  %351 = vmatmul.f32.gmra.mxu0 %v279
  %v352 = vpop.f32.mrf.mxu0
  %v353 = vadd.f32 0.0, %v352
  %354 = vmatmul.f32.gmra.mxu0 %v280
  %v355 = vpop.f32.mrf.mxu0
  %v356 = vadd.f32 0.0, %v355
  %357 = vmatmul.f32.gmra.mxu0 %v281
  %v358 = vpop.f32.mrf.mxu0
  %v359 = vadd.f32 0.0, %v358
  %360 = vmatmul.f32.gmra.mxu0 %v282
  %v361 = vpop.f32.mrf.mxu0
  %v362 = vadd.f32 0.0, %v361
  %363 = vmatmul.f32.gmra.mxu0 %v283
  %v364 = vpop.f32.mrf.mxu0
  %v365 = vadd.f32 0.0, %v364
  %366 = vmatmul.f32.gmra.mxu0 %v284
  %v367 = vpop.f32.mrf.mxu0
  %v368 = vadd.f32 0.0, %v367
  %369 = vmatmul.f32.gmra.mxu0 %v285
  %v370 = vpop.f32.mrf.mxu0
  %v371 = vadd.f32 0.0, %v370
  %372 = vmatmul.f32.gmra.mxu0 %v286
  %v373 = vpop.f32.mrf.mxu0
  %v374 = vadd.f32 0.0, %v373
  %375 = vmatmul.f32.gmra.mxu0 %v287
  %v376 = vpop.f32.mrf.mxu0
  %v377 = vadd.f32 0.0, %v376
  %378 = vmatmul.f32.gmra.mxu0 %v288
  %v379 = vpop.f32.mrf.mxu0
  %v380 = vadd.f32 0.0, %v379
  %381 = vmatmul.f32.gmra.mxu0 %v289
  %v382 = vpop.f32.mrf.mxu0
  %v383 = vadd.f32 0.0, %v382
  %384 = vmatmul.f32.gmra.mxu0 %v290
  %v385 = vpop.f32.mrf.mxu0
  %v386 = vadd.f32 0.0, %v385
  %387 = vmatmul.f32.gmra.mxu0 %v291
  %v388 = vpop.f32.mrf.mxu0
  %v389 = vadd.f32 0.0, %v388
  %390 = vmatmul.f32.gmra.mxu0 %v292
  %v391 = vpop.f32.mrf.mxu0
  %v392 = vadd.f32 0.0, %v391
  %393 = vmatmul.f32.gmra.mxu0 %v293
  %v394 = vpop.f32.mrf.mxu0
  %v395 = vadd.f32 0.0, %v394
  %396 = vmatmul.f32.gmra.mxu0 %v294
  %v397 = vpop.f32.mrf.mxu0
  %v398 = vadd.f32 0.0, %v397
  %399 = vmatmul.f32.gmra.mxu0 %v295
  %v400 = vpop.f32.mrf.mxu0
  %v401 = vadd.f32 0.0, %v400
  %402 = vmatmul.f32.gmra.mxu0 %v296
  %v403 = vpop.f32.mrf.mxu0
  %v404 = vadd.f32 0.0, %v403
  %405 = vmatmul.f32.gmra.mxu0 %v297
  %v406 = vpop.f32.mrf.mxu0
  %v407 = vadd.f32 0.0, %v406
  %408 = vmatmul.f32.gmra.mxu0 %v298
  %v409 = vpop.f32.mrf.mxu0
  %v410 = vadd.f32 0.0, %v409
  %411 = vmatmul.f32.gmra.mxu0 %v299
  %v412 = vpop.f32.mrf.mxu0
  %v413 = vadd.f32 0.0, %v412
  %414 = vmatmul.f32.gmra.mxu0 %v300
  %v415 = vpop.f32.mrf.mxu0
  %v416 = vadd.f32 0.0, %v415
  %417 = vmatmul.f32.gmra.mxu0 %v301
  %v418 = vpop.f32.mrf.mxu0
  %v419 = vadd.f32 0.0, %v418
  %420 = vmatmul.f32.gmra.mxu0 %v302
  %v421 = vpop.f32.mrf.mxu0
  %v422 = vadd.f32 0.0, %v421
  %423 = vmatmul.f32.gmra.mxu0 %v303
  %v424 = vpop.f32.mrf.mxu0
  %v425 = vadd.f32 0.0, %v424
  %426 = vmatmul.f32.gmra.mxu0 %v304
  %v427 = vpop.f32.mrf.mxu0
  %v428 = vadd.f32 0.0, %v427
  %429 = vmatmul.f32.gmra.mxu0 %v305
  %v430 = vpop.f32.mrf.mxu0
  %v431 = vadd.f32 0.0, %v430
  %432 = vmatmul.f32.gmra.mxu0 %v306
  %v433 = vpop.f32.mrf.mxu0
  %v434 = vadd.f32 0.0, %v433
  %435 = vdwg.mxu0
  %v436 = vadd.f32 %v341, %v344
  %v437 = vadd.f32 %v436, %v347
  %v438 = vadd.f32 %v437, %v350
  %v439 = vadd.f32 %v438, %v353
  %v440 = vadd.f32 %v439, %v356
  %v441 = vadd.f32 %v440, %v359
  %v442 = vadd.f32 %v441, %v362
  %v443 = vadd.f32 %v442, %v365
  %v444 = vadd.f32 %v443, %v368
  %v445 = vadd.f32 %v444, %v371
  %v446 = vadd.f32 %v445, %v374
  %v447 = vadd.f32 %v446, %v377
  %v448 = vadd.f32 %v447, %v380
  %v449 = vadd.f32 %v448, %v383
  %v450 = vadd.f32 %v449, %v386
  %v451 = vadd.f32 %v450, %v389
  %v452 = vadd.f32 %v451, %v392
  %v453 = vadd.f32 %v452, %v395
  %v454 = vadd.f32 %v453, %v398
  %v455 = vadd.f32 %v454, %v401
  %v456 = vadd.f32 %v455, %v404
  %v457 = vadd.f32 %v456, %v407
  %v458 = vadd.f32 %v457, %v410
  %v459 = vadd.f32 %v458, %v413
  %v460 = vadd.f32 %v459, %v416
  %v461 = vadd.f32 %v460, %v419
  %v462 = vadd.f32 %v461, %v422
  %v463 = vadd.f32 %v462, %v425
  %v464 = vadd.f32 %v463, %v428
  %v465 = vadd.f32 %v464, %v431
  %v466 = vadd.f32 %v465, %v434
  %v467 = vrot.slane %v466, 4
  %v468 = vadd.f32 %v466, %v467
  %v469 = vrot.slane %v468, 2
  %v470 = vadd.f32 %v468, %v469
  %v471 = vrot.slane %v470, 1
  %v472 = vadd.f32 %v470, %v471
  %v473 = vrcp.pop 256.0
  %v474 = vmul.f32 256.0, %v473
  %v475 = vsub.f32 1.0, %v474
  %v476 = vmul.f32 %v473, %v475
  %v477 = vadd.f32 %v473, %v476
  %vm478 = vweird.f32 %v473
  %v479 = vsel %vm478, %v473, %v477
  %v480 = vmul.f32 %v472, %v479
  %v481 = vsub.f32 %v341, %v480
  %v482 = vsub.f32 %v344, %v480
  %v483 = vsub.f32 %v347, %v480
  %v484 = vsub.f32 %v350, %v480
  %v485 = vsub.f32 %v353, %v480
  %v486 = vsub.f32 %v356, %v480
  %v487 = vsub.f32 %v359, %v480
  %v488 = vsub.f32 %v362, %v480
  %v489 = vsub.f32 %v365, %v480
  %v490 = vsub.f32 %v368, %v480
  %v491 = vsub.f32 %v371, %v480
  %v492 = vsub.f32 %v374, %v480
  %v493 = vsub.f32 %v377, %v480
  %v494 = vsub.f32 %v380, %v480
  %v495 = vsub.f32 %v383, %v480
  %v496 = vsub.f32 %v386, %v480
  %v497 = vsub.f32 %v389, %v480
  %v498 = vsub.f32 %v392, %v480
  %v499 = vsub.f32 %v395, %v480
  %v500 = vsub.f32 %v398, %v480
  %v501 = vsub.f32 %v401, %v480
  %v502 = vsub.f32 %v404, %v480
  %v503 = vsub.f32 %v407, %v480
  %v504 = vsub.f32 %v410, %v480
  %v505 = vsub.f32 %v413, %v480
  %v506 = vsub.f32 %v416, %v480
  %v507 = vsub.f32 %v419, %v480
  %v508 = vsub.f32 %v422, %v480
  %v509 = vsub.f32 %v425, %v480
  %v510 = vsub.f32 %v428, %v480
  %v511 = vsub.f32 %v431, %v480
  %v512 = vsub.f32 %v434, %v480
  %v513 = vmul.f32 %v481, %v481
  %v514 = vmul.f32 %v482, %v482
  %v515 = vmul.f32 %v483, %v483
  %v516 = vmul.f32 %v484, %v484
  %v517 = vmul.f32 %v485, %v485
  %v518 = vmul.f32 %v486, %v486
  %v519 = vmul.f32 %v487, %v487
  %v520 = vmul.f32 %v488, %v488
  %v521 = vmul.f32 %v489, %v489
  %v522 = vmul.f32 %v490, %v490
  %v523 = vmul.f32 %v491, %v491
  %v524 = vmul.f32 %v492, %v492
  %v525 = vmul.f32 %v493, %v493
  %v526 = vmul.f32 %v494, %v494
  %v527 = vmul.f32 %v495, %v495
  %v528 = vmul.f32 %v496, %v496
  %v529 = vmul.f32 %v497, %v497
  %v530 = vmul.f32 %v498, %v498
  %v531 = vmul.f32 %v499, %v499
  %v532 = vmul.f32 %v500, %v500
  %v533 = vmul.f32 %v501, %v501
  %v534 = vmul.f32 %v502, %v502
  %v535 = vmul.f32 %v503, %v503
  %v536 = vmul.f32 %v504, %v504
  %v537 = vmul.f32 %v505, %v505
  %v538 = vmul.f32 %v506, %v506
  %v539 = vmul.f32 %v507, %v507
  %v540 = vmul.f32 %v508, %v508
  %v541 = vmul.f32 %v509, %v509
  %v542 = vmul.f32 %v510, %v510
  %v543 = vmul.f32 %v511, %v511
  %v544 = vmul.f32 %v512, %v512
  %v545 = vadd.f32 %v513, %v514
  %v546 = vadd.f32 %v545, %v515
  %v547 = vadd.f32 %v546, %v516
  %v548 = vadd.f32 %v547, %v517
  %v549 = vadd.f32 %v548, %v518
  %v550 = vadd.f32 %v549, %v519
  %v551 = vadd.f32 %v550, %v520
  %v552 = vadd.f32 %v551, %v521
  %v553 = vadd.f32 %v552, %v522
  %v554 = vadd.f32 %v553, %v523
  %v555 = vadd.f32 %v554, %v524
  %v556 = vadd.f32 %v555, %v525
  %v557 = vadd.f32 %v556, %v526
  %v558 = vadd.f32 %v557, %v527
  %v559 = vadd.f32 %v558, %v528
  %v560 = vadd.f32 %v559, %v529
  %v561 = vadd.f32 %v560, %v530
  %v562 = vadd.f32 %v561, %v531
  %v563 = vadd.f32 %v562, %v532
  %v564 = vadd.f32 %v563, %v533
  %v565 = vadd.f32 %v564, %v534
  %v566 = vadd.f32 %v565, %v535
  %v567 = vadd.f32 %v566, %v536
  %v568 = vadd.f32 %v567, %v537
  %v569 = vadd.f32 %v568, %v538
  %v570 = vadd.f32 %v569, %v539
  %v571 = vadd.f32 %v570, %v540
  %v572 = vadd.f32 %v571, %v541
  %v573 = vadd.f32 %v572, %v542
  %v574 = vadd.f32 %v573, %v543
  %v575 = vadd.f32 %v574, %v544
  %v576 = vrot.slane %v575, 4
  %v577 = vadd.f32 %v575, %v576
  %v578 = vrot.slane %v577, 2
  %v579 = vadd.f32 %v577, %v578
  %v580 = vrot.slane %v579, 1
  %v581 = vadd.f32 %v579, %v580
  %v582 = vmul.f32 %v581, %v479
  %v583 = vadd.f32 %v582, 1e-05
  %v584 = vrsqrt.pop %v583
  %v585 = vmul.f32 %v584, %v583
  %v586 = vmul.f32 %v585, %v584
  %v587 = vmul.f32 0.5, %v586
  %v588 = vsub.f32 1.5, %v587
  %v589 = vmul.f32 %v584, %v588
  %vm590 = vweird.f32 %v583
  %vm591 = vweird.f32 %v584
  %vm592 = vmor %vm590, %vm591
  %v593 = vsel %vm592, %v584, %v589
  %v594 = vmul.f32 %v24, %v593
  %v595 = vmul.f32 %v480, %v594
  %v596 = vsub.f32 %v25, %v595
  %v597 = vperm.slane %v594, 0
  %v598 = vmul.f32 %v341, %v597
  %v599 = vmul.f32 %v344, %v597
  %v600 = vmul.f32 %v347, %v597
  %v601 = vmul.f32 %v350, %v597
  %v602 = vmul.f32 %v353, %v597
  %v603 = vmul.f32 %v356, %v597
  %v604 = vmul.f32 %v359, %v597
  %v605 = vmul.f32 %v362, %v597
  %v606 = vmul.f32 %v365, %v597
  %v607 = vmul.f32 %v368, %v597
  %v608 = vmul.f32 %v371, %v597
  %v609 = vmul.f32 %v374, %v597
  %v610 = vmul.f32 %v377, %v597
  %v611 = vmul.f32 %v380, %v597
  %v612 = vmul.f32 %v383, %v597
  %v613 = vmul.f32 %v386, %v597
  %v614 = vmul.f32 %v389, %v597
  %v615 = vmul.f32 %v392, %v597
  %v616 = vmul.f32 %v395, %v597
  %v617 = vmul.f32 %v398, %v597
  %v618 = vmul.f32 %v401, %v597
  %v619 = vmul.f32 %v404, %v597
  %v620 = vmul.f32 %v407, %v597
  %v621 = vmul.f32 %v410, %v597
  %v622 = vmul.f32 %v413, %v597
  %v623 = vmul.f32 %v416, %v597
  %v624 = vmul.f32 %v419, %v597
  %v625 = vmul.f32 %v422, %v597
  %v626 = vmul.f32 %v425, %v597
  %v627 = vmul.f32 %v428, %v597
  %v628 = vmul.f32 %v431, %v597
  %v629 = vmul.f32 %v434, %v597
  %v630 = vperm.slane %v596, 0
  %v631 = vadd.f32 %v598, %v630
  %v632 = vadd.f32 %v599, %v630
  %v633 = vadd.f32 %v600, %v630
  %v634 = vadd.f32 %v601, %v630
  %v635 = vadd.f32 %v602, %v630
  %v636 = vadd.f32 %v603, %v630
  %v637 = vadd.f32 %v604, %v630
  %v638 = vadd.f32 %v605, %v630
  %v639 = vadd.f32 %v606, %v630
  %v640 = vadd.f32 %v607, %v630
  %v641 = vadd.f32 %v608, %v630
  %v642 = vadd.f32 %v609, %v630
  %v643 = vadd.f32 %v610, %v630
  %v644 = vadd.f32 %v611, %v630
  %v645 = vadd.f32 %v612, %v630
  %v646 = vadd.f32 %v613, %v630
  %v647 = vadd.f32 %v614, %v630
  %v648 = vadd.f32 %v615, %v630
  %v649 = vadd.f32 %v616, %v630
  %v650 = vadd.f32 %v617, %v630
  %v651 = vadd.f32 %v618, %v630
  %v652 = vadd.f32 %v619, %v630
  %v653 = vadd.f32 %v620, %v630
  %v654 = vadd.f32 %v621, %v630
  %v655 = vadd.f32 %v622, %v630
  %v656 = vadd.f32 %v623, %v630
  %v657 = vadd.f32 %v624, %v630
  %v658 = vadd.f32 %v625, %v630
  %v659 = vadd.f32 %v626, %v630
  %v660 = vadd.f32 %v627, %v630
  %v661 = vadd.f32 %v628, %v630
  %v662 = vadd.f32 %v629, %v630
  %v663 = vmax.f32 %v631, 0.0
  %v664 = vmax.f32 %v632, 0.0
  %v665 = vmax.f32 %v633, 0.0
  %v666 = vmax.f32 %v634, 0.0
  %v667 = vmax.f32 %v635, 0.0
  %v668 = vmax.f32 %v636, 0.0
  %v669 = vmax.f32 %v637, 0.0
  %v670 = vmax.f32 %v638, 0.0
  %v671 = vmax.f32 %v639, 0.0
  %v672 = vmax.f32 %v640, 0.0
  %v673 = vmax.f32 %v641, 0.0
  %v674 = vmax.f32 %v642, 0.0
  %v675 = vmax.f32 %v643, 0.0
  %v676 = vmax.f32 %v644, 0.0
  %v677 = vmax.f32 %v645, 0.0
  %v678 = vmax.f32 %v646, 0.0
  %v679 = vmax.f32 %v647, 0.0
  %v680 = vmax.f32 %v648, 0.0
  %v681 = vmax.f32 %v649, 0.0
  %v682 = vmax.f32 %v650, 0.0
  %v683 = vmax.f32 %v651, 0.0
  %v684 = vmax.f32 %v652, 0.0
  %v685 = vmax.f32 %v653, 0.0
  %v686 = vmax.f32 %v654, 0.0
  %v687 = vmax.f32 %v655, 0.0
  %v688 = vmax.f32 %v656, 0.0
  %v689 = vmax.f32 %v657, 0.0
  %v690 = vmax.f32 %v658, 0.0
  %v691 = vmax.f32 %v659, 0.0
  %v692 = vmax.f32 %v660, 0.0
  %v693 = vmax.f32 %v661, 0.0
  %v694 = vmax.f32 %v662, 0.0
  %v695 = vld [vmem:[%s3] sm:$0xff]
  %v696 = vld [vmem:[%s3 + $0x8] sm:$0xff]
  %v697 = vld [vmem:[%s3 + $0x10] sm:$0xff]
  %v698 = vld [vmem:[%s3 + $0x18] sm:$0xff]
  %v699 = vld [vmem:[%s3 + $0x20] sm:$0xff]
  %v700 = vld [vmem:[%s3 + $0x28] sm:$0xff]
  %v701 = vld [vmem:[%s3 + $0x30] sm:$0xff]
  %v702 = vld [vmem:[%s3 + $0x38] sm:$0xff]
  %v703 = vld [vmem:[%s3 + $0x40] sm:$0xff]
  %v704 = vld [vmem:[%s3 + $0x48] sm:$0xff]
  %v705 = vld [vmem:[%s3 + $0x50] sm:$0xff]
  %v706 = vld [vmem:[%s3 + $0x58] sm:$0xff]
  %v707 = vld [vmem:[%s3 + $0x60] sm:$0xff]
  %v708 = vld [vmem:[%s3 + $0x68] sm:$0xff]
  %v709 = vld [vmem:[%s3 + $0x70] sm:$0xff]
  %v710 = vld [vmem:[%s3 + $0x78] sm:$0xff]
  %711 = vmatpush.msra.mxu0 %v710
  %712 = vmatpush.msra.mxu0 %v709
  %713 = vmatpush.msra.mxu0 %v708
  %714 = vmatpush.msra.mxu0 %v707
  %715 = vmatpush.msra.mxu0 %v706
  %716 = vmatpush.msra.mxu0 %v705
  %717 = vmatpush.msra.mxu0 %v704
  %718 = vmatpush.msra.mxu0 %v703
  %719 = vmatpush.msra.mxu0 %v702
  %720 = vmatpush.msra.mxu0 %v701
  %721 = vmatpush.msra.mxu0 %v700
  %722 = vmatpush.msra.mxu0 %v699
  %723 = vmatpush.msra.mxu0 %v698
  %724 = vmatpush.msra.mxu0 %v697
  %725 = vmatpush.msra.mxu0 %v696
  %726 = vmatpush.msra.mxu0 %v695
  %727 = vmatmul.f32.gmra.mxu0 %v663
  %v728 = vpop.f32.mrf.mxu0
  %v729 = vadd.f32 0.0, %v728
  %730 = vmatmul.f32.gmra.mxu0 %v664
  %v731 = vpop.f32.mrf.mxu0
  %v732 = vadd.f32 0.0, %v731
  %733 = vmatmul.f32.gmra.mxu0 %v665
  %v734 = vpop.f32.mrf.mxu0
  %v735 = vadd.f32 0.0, %v734
  %736 = vmatmul.f32.gmra.mxu0 %v666
  %v737 = vpop.f32.mrf.mxu0
  %v738 = vadd.f32 0.0, %v737
  %739 = vmatmul.f32.gmra.mxu0 %v667
  %v740 = vpop.f32.mrf.mxu0
  %v741 = vadd.f32 0.0, %v740
  %742 = vmatmul.f32.gmra.mxu0 %v668
  %v743 = vpop.f32.mrf.mxu0
  %v744 = vadd.f32 0.0, %v743
  %745 = vmatmul.f32.gmra.mxu0 %v669
  %v746 = vpop.f32.mrf.mxu0
  %v747 = vadd.f32 0.0, %v746
  %748 = vmatmul.f32.gmra.mxu0 %v670
  %v749 = vpop.f32.mrf.mxu0
  %v750 = vadd.f32 0.0, %v749
  %751 = vmatmul.f32.gmra.mxu0 %v671
  %v752 = vpop.f32.mrf.mxu0
  %v753 = vadd.f32 0.0, %v752
  %754 = vmatmul.f32.gmra.mxu0 %v672
  %v755 = vpop.f32.mrf.mxu0
  %v756 = vadd.f32 0.0, %v755
  %757 = vmatmul.f32.gmra.mxu0 %v673
  %v758 = vpop.f32.mrf.mxu0
  %v759 = vadd.f32 0.0, %v758
  %760 = vmatmul.f32.gmra.mxu0 %v674
  %v761 = vpop.f32.mrf.mxu0
  %v762 = vadd.f32 0.0, %v761
  %763 = vmatmul.f32.gmra.mxu0 %v675
  %v764 = vpop.f32.mrf.mxu0
  %v765 = vadd.f32 0.0, %v764
  %766 = vmatmul.f32.gmra.mxu0 %v676
  %v767 = vpop.f32.mrf.mxu0
  %v768 = vadd.f32 0.0, %v767
  %769 = vmatmul.f32.gmra.mxu0 %v677
  %v770 = vpop.f32.mrf.mxu0
  %v771 = vadd.f32 0.0, %v770
  %772 = vmatmul.f32.gmra.mxu0 %v678
  %v773 = vpop.f32.mrf.mxu0
  %v774 = vadd.f32 0.0, %v773
  %775 = vmatmul.f32.gmra.mxu0 %v679
  %v776 = vpop.f32.mrf.mxu0
  %v777 = vadd.f32 0.0, %v776
  %778 = vmatmul.f32.gmra.mxu0 %v680
  %v779 = vpop.f32.mrf.mxu0
  %v780 = vadd.f32 0.0, %v779
  %781 = vmatmul.f32.gmra.mxu0 %v681
  %v782 = vpop.f32.mrf.mxu0
  %v783 = vadd.f32 0.0, %v782
  %784 = vmatmul.f32.gmra.mxu0 %v682
  %v785 = vpop.f32.mrf.mxu0
  %v786 = vadd.f32 0.0, %v785
  %787 = vmatmul.f32.gmra.mxu0 %v683
  %v788 = vpop.f32.mrf.mxu0
  %v789 = vadd.f32 0.0, %v788
  %790 = vmatmul.f32.gmra.mxu0 %v684
  %v791 = vpop.f32.mrf.mxu0
  %v792 = vadd.f32 0.0, %v791
  %793 = vmatmul.f32.gmra.mxu0 %v685
  %v794 = vpop.f32.mrf.mxu0
  %v795 = vadd.f32 0.0, %v794
  %796 = vmatmul.f32.gmra.mxu0 %v686
  %v797 = vpop.f32.mrf.mxu0
  %v798 = vadd.f32 0.0, %v797
  %799 = vmatmul.f32.gmra.mxu0 %v687
  %v800 = vpop.f32.mrf.mxu0
  %v801 = vadd.f32 0.0, %v800
  %802 = vmatmul.f32.gmra.mxu0 %v688
  %v803 = vpop.f32.mrf.mxu0
  %v804 = vadd.f32 0.0, %v803
  %805 = vmatmul.f32.gmra.mxu0 %v689
  %v806 = vpop.f32.mrf.mxu0
  %v807 = vadd.f32 0.0, %v806
  %808 = vmatmul.f32.gmra.mxu0 %v690
  %v809 = vpop.f32.mrf.mxu0
  %v810 = vadd.f32 0.0, %v809
  %811 = vmatmul.f32.gmra.mxu0 %v691
  %v812 = vpop.f32.mrf.mxu0
  %v813 = vadd.f32 0.0, %v812
  %814 = vmatmul.f32.gmra.mxu0 %v692
  %v815 = vpop.f32.mrf.mxu0
  %v816 = vadd.f32 0.0, %v815
  %817 = vmatmul.f32.gmra.mxu0 %v693
  %v818 = vpop.f32.mrf.mxu0
  %v819 = vadd.f32 0.0, %v818
  %820 = vmatmul.f32.gmra.mxu0 %v694
  %v821 = vpop.f32.mrf.mxu0
  %v822 = vadd.f32 0.0, %v821
  %823 = vdwg.mxu0
  %v824 = vadd.f32 %v729, %v732
  %v825 = vadd.f32 %v824, %v735
  %v826 = vadd.f32 %v825, %v738
  %v827 = vadd.f32 %v826, %v741
  %v828 = vadd.f32 %v827, %v744
  %v829 = vadd.f32 %v828, %v747
  %v830 = vadd.f32 %v829, %v750
  %v831 = vadd.f32 %v830, %v753
  %v832 = vadd.f32 %v831, %v756
  %v833 = vadd.f32 %v832, %v759
  %v834 = vadd.f32 %v833, %v762
  %v835 = vadd.f32 %v834, %v765
  %v836 = vadd.f32 %v835, %v768
  %v837 = vadd.f32 %v836, %v771
  %v838 = vadd.f32 %v837, %v774
  %v839 = vadd.f32 %v838, %v777
  %v840 = vadd.f32 %v839, %v780
  %v841 = vadd.f32 %v840, %v783
  %v842 = vadd.f32 %v841, %v786
  %v843 = vadd.f32 %v842, %v789
  %v844 = vadd.f32 %v843, %v792
  %v845 = vadd.f32 %v844, %v795
  %v846 = vadd.f32 %v845, %v798
  %v847 = vadd.f32 %v846, %v801
  %v848 = vadd.f32 %v847, %v804
  %v849 = vadd.f32 %v848, %v807
  %v850 = vadd.f32 %v849, %v810
  %v851 = vadd.f32 %v850, %v813
  %v852 = vadd.f32 %v851, %v816
  %v853 = vadd.f32 %v852, %v819
  %v854 = vadd.f32 %v853, %v822
  %v855 = vrot.slane %v854, 4
  %v856 = vadd.f32 %v854, %v855
  %v857 = vrot.slane %v856, 2
  %v858 = vadd.f32 %v856, %v857
  %v859 = vrot.slane %v858, 1
  %v860 = vadd.f32 %v858, %v859
  %v861 = vmul.f32 %v860, %v479
  %v862 = vsub.f32 %v729, %v861
  %v863 = vsub.f32 %v732, %v861
  %v864 = vsub.f32 %v735, %v861
  %v865 = vsub.f32 %v738, %v861
  %v866 = vsub.f32 %v741, %v861
  %v867 = vsub.f32 %v744, %v861
  %v868 = vsub.f32 %v747, %v861
  %v869 = vsub.f32 %v750, %v861
  %v870 = vsub.f32 %v753, %v861
  %v871 = vsub.f32 %v756, %v861
  %v872 = vsub.f32 %v759, %v861
  %v873 = vsub.f32 %v762, %v861
  %v874 = vsub.f32 %v765, %v861
  %v875 = vsub.f32 %v768, %v861
  %v876 = vsub.f32 %v771, %v861
  %v877 = vsub.f32 %v774, %v861
  %v878 = vsub.f32 %v777, %v861
  %v879 = vsub.f32 %v780, %v861
  %v880 = vsub.f32 %v783, %v861
  %v881 = vsub.f32 %v786, %v861
  %v882 = vsub.f32 %v789, %v861
  %v883 = vsub.f32 %v792, %v861
  %v884 = vsub.f32 %v795, %v861
  %v885 = vsub.f32 %v798, %v861
  %v886 = vsub.f32 %v801, %v861
  %v887 = vsub.f32 %v804, %v861
  %v888 = vsub.f32 %v807, %v861
  %v889 = vsub.f32 %v810, %v861
  %v890 = vsub.f32 %v813, %v861
  %v891 = vsub.f32 %v816, %v861
  %v892 = vsub.f32 %v819, %v861
  %v893 = vsub.f32 %v822, %v861
  %v894 = vmul.f32 %v862, %v862
  %v895 = vmul.f32 %v863, %v863
  %v896 = vmul.f32 %v864, %v864
  %v897 = vmul.f32 %v865, %v865
  %v898 = vmul.f32 %v866, %v866
  %v899 = vmul.f32 %v867, %v867
  %v900 = vmul.f32 %v868, %v868
  %v901 = vmul.f32 %v869, %v869
  %v902 = vmul.f32 %v870, %v870
  %v903 = vmul.f32 %v871, %v871
  %v904 = vmul.f32 %v872, %v872
  %v905 = vmul.f32 %v873, %v873
  %v906 = vmul.f32 %v874, %v874
  %v907 = vmul.f32 %v875, %v875
  %v908 = vmul.f32 %v876, %v876
  %v909 = vmul.f32 %v877, %v877
  %v910 = vmul.f32 %v878, %v878
  %v911 = vmul.f32 %v879, %v879
  %v912 = vmul.f32 %v880, %v880
  %v913 = vmul.f32 %v881, %v881
  %v914 = vmul.f32 %v882, %v882
  %v915 = vmul.f32 %v883, %v883
  %v916 = vmul.f32 %v884, %v884
  %v917 = vmul.f32 %v885, %v885
  %v918 = vmul.f32 %v886, %v886
  %v919 = vmul.f32 %v887, %v887
  %v920 = vmul.f32 %v888, %v888
  %v921 = vmul.f32 %v889, %v889
  %v922 = vmul.f32 %v890, %v890
  %v923 = vmul.f32 %v891, %v891
  %v924 = vmul.f32 %v892, %v892
  %v925 = vmul.f32 %v893, %v893
  %v926 = vadd.f32 %v894, %v895
  %v927 = vadd.f32 %v926, %v896
  %v928 = vadd.f32 %v927, %v897
  %v929 = vadd.f32 %v928, %v898
  %v930 = vadd.f32 %v929, %v899
  %v931 = vadd.f32 %v930, %v900
  %v932 = vadd.f32 %v931, %v901
  %v933 = vadd.f32 %v932, %v902
  %v934 = vadd.f32 %v933, %v903
  %v935 = vadd.f32 %v934, %v904
  %v936 = vadd.f32 %v935, %v905
  %v937 = vadd.f32 %v936, %v906
  %v938 = vadd.f32 %v937, %v907
  %v939 = vadd.f32 %v938, %v908
  %v940 = vadd.f32 %v939, %v909
  %v941 = vadd.f32 %v940, %v910
  %v942 = vadd.f32 %v941, %v911
  %v943 = vadd.f32 %v942, %v912
  %v944 = vadd.f32 %v943, %v913
  %v945 = vadd.f32 %v944, %v914
  %v946 = vadd.f32 %v945, %v915
  %v947 = vadd.f32 %v946, %v916
  %v948 = vadd.f32 %v947, %v917
  %v949 = vadd.f32 %v948, %v918
  %v950 = vadd.f32 %v949, %v919
  %v951 = vadd.f32 %v950, %v920
  %v952 = vadd.f32 %v951, %v921
  %v953 = vadd.f32 %v952, %v922
  %v954 = vadd.f32 %v953, %v923
  %v955 = vadd.f32 %v954, %v924
  %v956 = vadd.f32 %v955, %v925
  %v957 = vrot.slane %v956, 4
  %v958 = vadd.f32 %v956, %v957
  %v959 = vrot.slane %v958, 2
  %v960 = vadd.f32 %v958, %v959
  %v961 = vrot.slane %v960, 1
  %v962 = vadd.f32 %v960, %v961
  %v963 = vmul.f32 %v962, %v479
  %v964 = vadd.f32 %v963, 1e-05
  %v965 = vrsqrt.pop %v964
  %v966 = vmul.f32 %v965, %v964
  %v967 = vmul.f32 %v966, %v965
  %v968 = vmul.f32 0.5, %v967
  %v969 = vsub.f32 1.5, %v968
  %v970 = vmul.f32 %v965, %v969
  %vm971 = vweird.f32 %v964
  %vm972 = vweird.f32 %v965
  %vm973 = vmor %vm971, %vm972
  %v974 = vsel %vm973, %v965, %v970
  %v975 = vmul.f32 %v26, %v974
  %v976 = vmul.f32 %v861, %v975
  %v977 = vsub.f32 %v27, %v976
  %v978 = vperm.slane %v975, 0
  %v979 = vmul.f32 %v729, %v978
  %v980 = vmul.f32 %v732, %v978
  %v981 = vmul.f32 %v735, %v978
  %v982 = vmul.f32 %v738, %v978
  %v983 = vmul.f32 %v741, %v978
  %v984 = vmul.f32 %v744, %v978
  %v985 = vmul.f32 %v747, %v978
  %v986 = vmul.f32 %v750, %v978
  %v987 = vmul.f32 %v753, %v978
  %v988 = vmul.f32 %v756, %v978
  %v989 = vmul.f32 %v759, %v978
  %v990 = vmul.f32 %v762, %v978
  %v991 = vmul.f32 %v765, %v978
  %v992 = vmul.f32 %v768, %v978
  %v993 = vmul.f32 %v771, %v978
  %v994 = vmul.f32 %v774, %v978
  %v995 = vmul.f32 %v777, %v978
  %v996 = vmul.f32 %v780, %v978
  %v997 = vmul.f32 %v783, %v978
  %v998 = vmul.f32 %v786, %v978
  %v999 = vmul.f32 %v789, %v978
  %v1000 = vmul.f32 %v792, %v978
  %v1001 = vmul.f32 %v795, %v978
  %v1002 = vmul.f32 %v798, %v978
  %v1003 = vmul.f32 %v801, %v978
  %v1004 = vmul.f32 %v804, %v978
  %v1005 = vmul.f32 %v807, %v978
  %v1006 = vmul.f32 %v810, %v978
  %v1007 = vmul.f32 %v813, %v978
  %v1008 = vmul.f32 %v816, %v978
  %v1009 = vmul.f32 %v819, %v978
  %v1010 = vmul.f32 %v822, %v978
  %v1011 = vperm.slane %v977, 0
  %v1012 = vadd.f32 %v979, %v1011
  %v1013 = vadd.f32 %v980, %v1011
  %v1014 = vadd.f32 %v981, %v1011
  %v1015 = vadd.f32 %v982, %v1011
  %v1016 = vadd.f32 %v983, %v1011
  %v1017 = vadd.f32 %v984, %v1011
  %v1018 = vadd.f32 %v985, %v1011
  %v1019 = vadd.f32 %v986, %v1011
  %v1020 = vadd.f32 %v987, %v1011
  %v1021 = vadd.f32 %v988, %v1011
  %v1022 = vadd.f32 %v989, %v1011
  %v1023 = vadd.f32 %v990, %v1011
  %v1024 = vadd.f32 %v991, %v1011
  %v1025 = vadd.f32 %v992, %v1011
  %v1026 = vadd.f32 %v993, %v1011
  %v1027 = vadd.f32 %v994, %v1011
  %v1028 = vadd.f32 %v995, %v1011
  %v1029 = vadd.f32 %v996, %v1011
  %v1030 = vadd.f32 %v997, %v1011
  %v1031 = vadd.f32 %v998, %v1011
  %v1032 = vadd.f32 %v999, %v1011
  %v1033 = vadd.f32 %v1000, %v1011
  %v1034 = vadd.f32 %v1001, %v1011
  %v1035 = vadd.f32 %v1002, %v1011
  %v1036 = vadd.f32 %v1003, %v1011
  %v1037 = vadd.f32 %v1004, %v1011
  %v1038 = vadd.f32 %v1005, %v1011
  %v1039 = vadd.f32 %v1006, %v1011
  %v1040 = vadd.f32 %v1007, %v1011
  %v1041 = vadd.f32 %v1008, %v1011
  %v1042 = vadd.f32 %v1009, %v1011
  %v1043 = vadd.f32 %v1010, %v1011
  %v1044 = vmax.f32 %v1012, 0.0
  %v1045 = vmax.f32 %v1013, 0.0
  %v1046 = vmax.f32 %v1014, 0.0
  %v1047 = vmax.f32 %v1015, 0.0
  %v1048 = vmax.f32 %v1016, 0.0
  %v1049 = vmax.f32 %v1017, 0.0
  %v1050 = vmax.f32 %v1018, 0.0
  %v1051 = vmax.f32 %v1019, 0.0
  %v1052 = vmax.f32 %v1020, 0.0
  %v1053 = vmax.f32 %v1021, 0.0
  %v1054 = vmax.f32 %v1022, 0.0
  %v1055 = vmax.f32 %v1023, 0.0
  %v1056 = vmax.f32 %v1024, 0.0
  %v1057 = vmax.f32 %v1025, 0.0
  %v1058 = vmax.f32 %v1026, 0.0
  %v1059 = vmax.f32 %v1027, 0.0
  %v1060 = vmax.f32 %v1028, 0.0
  %v1061 = vmax.f32 %v1029, 0.0
  %v1062 = vmax.f32 %v1030, 0.0
  %v1063 = vmax.f32 %v1031, 0.0
  %v1064 = vmax.f32 %v1032, 0.0
  %v1065 = vmax.f32 %v1033, 0.0
  %v1066 = vmax.f32 %v1034, 0.0
  %v1067 = vmax.f32 %v1035, 0.0
  %v1068 = vmax.f32 %v1036, 0.0
  %v1069 = vmax.f32 %v1037, 0.0
  %v1070 = vmax.f32 %v1038, 0.0
  %v1071 = vmax.f32 %v1039, 0.0
  %v1072 = vmax.f32 %v1040, 0.0
  %v1073 = vmax.f32 %v1041, 0.0
  %v1074 = vmax.f32 %v1042, 0.0
  %v1075 = vmax.f32 %v1043, 0.0
  %v1076 = vld [vmem:[%s4] sm:$0xff]
  %v1077 = vld [vmem:[%s4 + $0x8] sm:$0xff]
  %v1078 = vld [vmem:[%s4 + $0x10] sm:$0xff]
  %v1079 = vld [vmem:[%s4 + $0x18] sm:$0xff]
  %v1080 = vld [vmem:[%s4 + $0x20] sm:$0xff]
  %v1081 = vld [vmem:[%s4 + $0x28] sm:$0xff]
  %v1082 = vld [vmem:[%s4 + $0x30] sm:$0xff]
  %v1083 = vld [vmem:[%s4 + $0x38] sm:$0xff]
  %v1084 = vld [vmem:[%s4 + $0x40] sm:$0xff]
  %v1085 = vld [vmem:[%s4 + $0x48] sm:$0xff]
  %v1086 = vld [vmem:[%s4 + $0x50] sm:$0xff]
  %v1087 = vld [vmem:[%s4 + $0x58] sm:$0xff]
  %v1088 = vld [vmem:[%s4 + $0x60] sm:$0xff]
  %v1089 = vld [vmem:[%s4 + $0x68] sm:$0xff]
  %v1090 = vld [vmem:[%s4 + $0x70] sm:$0xff]
  %v1091 = vld [vmem:[%s4 + $0x78] sm:$0xff]
  %1092 = vmatpush.msra.mxu0 %v1091
  %1093 = vmatpush.msra.mxu0 %v1090
  %1094 = vmatpush.msra.mxu0 %v1089
  %1095 = vmatpush.msra.mxu0 %v1088
  %1096 = vmatpush.msra.mxu0 %v1087
  %1097 = vmatpush.msra.mxu0 %v1086
  %1098 = vmatpush.msra.mxu0 %v1085
  %1099 = vmatpush.msra.mxu0 %v1084
  %1100 = vmatpush.msra.mxu0 %v1083
  %1101 = vmatpush.msra.mxu0 %v1082
  %1102 = vmatpush.msra.mxu0 %v1081
  %1103 = vmatpush.msra.mxu0 %v1080
  %1104 = vmatpush.msra.mxu0 %v1079
  %1105 = vmatpush.msra.mxu0 %v1078
  %1106 = vmatpush.msra.mxu0 %v1077
  %1107 = vmatpush.msra.mxu0 %v1076
  %1108 = vmatmul.f32.gmra.mxu0 %v1044
  %v1109 = vpop.f32.mrf.mxu0
  %v1110 = vadd.f32 0.0, %v1109
  %1111 = vmatmul.f32.gmra.mxu0 %v1045
  %v1112 = vpop.f32.mrf.mxu0
  %v1113 = vadd.f32 0.0, %v1112
  %1114 = vmatmul.f32.gmra.mxu0 %v1046
  %v1115 = vpop.f32.mrf.mxu0
  %v1116 = vadd.f32 0.0, %v1115
  %1117 = vmatmul.f32.gmra.mxu0 %v1047
  %v1118 = vpop.f32.mrf.mxu0
  %v1119 = vadd.f32 0.0, %v1118
  %1120 = vmatmul.f32.gmra.mxu0 %v1048
  %v1121 = vpop.f32.mrf.mxu0
  %v1122 = vadd.f32 0.0, %v1121
  %1123 = vmatmul.f32.gmra.mxu0 %v1049
  %v1124 = vpop.f32.mrf.mxu0
  %v1125 = vadd.f32 0.0, %v1124
  %1126 = vmatmul.f32.gmra.mxu0 %v1050
  %v1127 = vpop.f32.mrf.mxu0
  %v1128 = vadd.f32 0.0, %v1127
  %1129 = vmatmul.f32.gmra.mxu0 %v1051
  %v1130 = vpop.f32.mrf.mxu0
  %v1131 = vadd.f32 0.0, %v1130
  %1132 = vmatmul.f32.gmra.mxu0 %v1052
  %v1133 = vpop.f32.mrf.mxu0
  %v1134 = vadd.f32 0.0, %v1133
  %1135 = vmatmul.f32.gmra.mxu0 %v1053
  %v1136 = vpop.f32.mrf.mxu0
  %v1137 = vadd.f32 0.0, %v1136
  %1138 = vmatmul.f32.gmra.mxu0 %v1054
  %v1139 = vpop.f32.mrf.mxu0
  %v1140 = vadd.f32 0.0, %v1139
  %1141 = vmatmul.f32.gmra.mxu0 %v1055
  %v1142 = vpop.f32.mrf.mxu0
  %v1143 = vadd.f32 0.0, %v1142
  %1144 = vmatmul.f32.gmra.mxu0 %v1056
  %v1145 = vpop.f32.mrf.mxu0
  %v1146 = vadd.f32 0.0, %v1145
  %1147 = vmatmul.f32.gmra.mxu0 %v1057
  %v1148 = vpop.f32.mrf.mxu0
  %v1149 = vadd.f32 0.0, %v1148
  %1150 = vmatmul.f32.gmra.mxu0 %v1058
  %v1151 = vpop.f32.mrf.mxu0
  %v1152 = vadd.f32 0.0, %v1151
  %1153 = vmatmul.f32.gmra.mxu0 %v1059
  %v1154 = vpop.f32.mrf.mxu0
  %v1155 = vadd.f32 0.0, %v1154
  %1156 = vmatmul.f32.gmra.mxu0 %v1060
  %v1157 = vpop.f32.mrf.mxu0
  %v1158 = vadd.f32 0.0, %v1157
  %1159 = vmatmul.f32.gmra.mxu0 %v1061
  %v1160 = vpop.f32.mrf.mxu0
  %v1161 = vadd.f32 0.0, %v1160
  %1162 = vmatmul.f32.gmra.mxu0 %v1062
  %v1163 = vpop.f32.mrf.mxu0
  %v1164 = vadd.f32 0.0, %v1163
  %1165 = vmatmul.f32.gmra.mxu0 %v1063
  %v1166 = vpop.f32.mrf.mxu0
  %v1167 = vadd.f32 0.0, %v1166
  %1168 = vmatmul.f32.gmra.mxu0 %v1064
  %v1169 = vpop.f32.mrf.mxu0
  %v1170 = vadd.f32 0.0, %v1169
  %1171 = vmatmul.f32.gmra.mxu0 %v1065
  %v1172 = vpop.f32.mrf.mxu0
  %v1173 = vadd.f32 0.0, %v1172
  %1174 = vmatmul.f32.gmra.mxu0 %v1066
  %v1175 = vpop.f32.mrf.mxu0
  %v1176 = vadd.f32 0.0, %v1175
  %1177 = vmatmul.f32.gmra.mxu0 %v1067
  %v1178 = vpop.f32.mrf.mxu0
  %v1179 = vadd.f32 0.0, %v1178
  %1180 = vmatmul.f32.gmra.mxu0 %v1068
  %v1181 = vpop.f32.mrf.mxu0
  %v1182 = vadd.f32 0.0, %v1181
  %1183 = vmatmul.f32.gmra.mxu0 %v1069
  %v1184 = vpop.f32.mrf.mxu0
  %v1185 = vadd.f32 0.0, %v1184
  %1186 = vmatmul.f32.gmra.mxu0 %v1070
  %v1187 = vpop.f32.mrf.mxu0
  %v1188 = vadd.f32 0.0, %v1187
  %1189 = vmatmul.f32.gmra.mxu0 %v1071
  %v1190 = vpop.f32.mrf.mxu0
  %v1191 = vadd.f32 0.0, %v1190
  %1192 = vmatmul.f32.gmra.mxu0 %v1072
  %v1193 = vpop.f32.mrf.mxu0
  %v1194 = vadd.f32 0.0, %v1193
  %1195 = vmatmul.f32.gmra.mxu0 %v1073
  %v1196 = vpop.f32.mrf.mxu0
  %v1197 = vadd.f32 0.0, %v1196
  %1198 = vmatmul.f32.gmra.mxu0 %v1074
  %v1199 = vpop.f32.mrf.mxu0
  %v1200 = vadd.f32 0.0, %v1199
  %1201 = vmatmul.f32.gmra.mxu0 %v1075
  %v1202 = vpop.f32.mrf.mxu0
  %v1203 = vadd.f32 0.0, %v1202
  %1204 = vdwg.mxu0
  %v1205 = vmax.f32 %v1110, 0.0
  %v1206 = vmax.f32 %v1113, 0.0
  %v1207 = vmax.f32 %v1116, 0.0
  %v1208 = vmax.f32 %v1119, 0.0
  %v1209 = vmax.f32 %v1122, 0.0
  %v1210 = vmax.f32 %v1125, 0.0
  %v1211 = vmax.f32 %v1128, 0.0
  %v1212 = vmax.f32 %v1131, 0.0
  %v1213 = vmax.f32 %v1134, 0.0
  %v1214 = vmax.f32 %v1137, 0.0
  %v1215 = vmax.f32 %v1140, 0.0
  %v1216 = vmax.f32 %v1143, 0.0
  %v1217 = vmax.f32 %v1146, 0.0
  %v1218 = vmax.f32 %v1149, 0.0
  %v1219 = vmax.f32 %v1152, 0.0
  %v1220 = vmax.f32 %v1155, 0.0
  %v1221 = vmax.f32 %v1158, 0.0
  %v1222 = vmax.f32 %v1161, 0.0
  %v1223 = vmax.f32 %v1164, 0.0
  %v1224 = vmax.f32 %v1167, 0.0
  %v1225 = vmax.f32 %v1170, 0.0
  %v1226 = vmax.f32 %v1173, 0.0
  %v1227 = vmax.f32 %v1176, 0.0
  %v1228 = vmax.f32 %v1179, 0.0
  %v1229 = vmax.f32 %v1182, 0.0
  %v1230 = vmax.f32 %v1185, 0.0
  %v1231 = vmax.f32 %v1188, 0.0
  %v1232 = vmax.f32 %v1191, 0.0
  %v1233 = vmax.f32 %v1194, 0.0
  %v1234 = vmax.f32 %v1197, 0.0
  %v1235 = vmax.f32 %v1200, 0.0
  %v1236 = vmax.f32 %v1203, 0.0
  %vm1237 = vcmask 130048
  %1238 = vst.msk [vmem:[%s6] sm:$0xff] %vm1237, %v1205
  %1239 = vst.msk [vmem:[%s6 + $0x8] sm:$0xff] %vm1237, %v1206
  %1240 = vst.msk [vmem:[%s6 + $0x10] sm:$0xff] %vm1237, %v1207
  %1241 = vst.msk [vmem:[%s6 + $0x18] sm:$0xff] %vm1237, %v1208
  %1242 = vst.msk [vmem:[%s6 + $0x20] sm:$0xff] %vm1237, %v1209
  %1243 = vst.msk [vmem:[%s6 + $0x28] sm:$0xff] %vm1237, %v1210
  %1244 = vst.msk [vmem:[%s6 + $0x30] sm:$0xff] %vm1237, %v1211
  %1245 = vst.msk [vmem:[%s6 + $0x38] sm:$0xff] %vm1237, %v1212
  %1246 = vst.msk [vmem:[%s6 + $0x40] sm:$0xff] %vm1237, %v1213
  %1247 = vst.msk [vmem:[%s6 + $0x48] sm:$0xff] %vm1237, %v1214
  %1248 = vst.msk [vmem:[%s6 + $0x50] sm:$0xff] %vm1237, %v1215
  %1249 = vst.msk [vmem:[%s6 + $0x58] sm:$0xff] %vm1237, %v1216
  %1250 = vst.msk [vmem:[%s6 + $0x60] sm:$0xff] %vm1237, %v1217
  %1251 = vst.msk [vmem:[%s6 + $0x68] sm:$0xff] %vm1237, %v1218
  %1252 = vst.msk [vmem:[%s6 + $0x70] sm:$0xff] %vm1237, %v1219
  %1253 = vst.msk [vmem:[%s6 + $0x78] sm:$0xff] %vm1237, %v1220
  %1254 = vst.msk [vmem:[%s6 + $0x80] sm:$0xff] %vm1237, %v1221
  %1255 = vst.msk [vmem:[%s6 + $0x88] sm:$0xff] %vm1237, %v1222
  %1256 = vst.msk [vmem:[%s6 + $0x90] sm:$0xff] %vm1237, %v1223
  %1257 = vst.msk [vmem:[%s6 + $0x98] sm:$0xff] %vm1237, %v1224
  %1258 = vst.msk [vmem:[%s6 + $0xa0] sm:$0xff] %vm1237, %v1225
  %1259 = vst.msk [vmem:[%s6 + $0xa8] sm:$0xff] %vm1237, %v1226
  %1260 = vst.msk [vmem:[%s6 + $0xb0] sm:$0xff] %vm1237, %v1227
  %1261 = vst.msk [vmem:[%s6 + $0xb8] sm:$0xff] %vm1237, %v1228
  %1262 = vst.msk [vmem:[%s6 + $0xc0] sm:$0xff] %vm1237, %v1229
  %1263 = vst.msk [vmem:[%s6 + $0xc8] sm:$0xff] %vm1237, %v1230
  %1264 = vst.msk [vmem:[%s6 + $0xd0] sm:$0xff] %vm1237, %v1231
  %1265 = vst.msk [vmem:[%s6 + $0xd8] sm:$0xff] %vm1237, %v1232
  %1266 = vst.msk [vmem:[%s6 + $0xe0] sm:$0xff] %vm1237, %v1233
  %1267 = vst.msk [vmem:[%s6 + $0xe8] sm:$0xff] %vm1237, %v1234
  %1268 = vst.msk [vmem:[%s6 + $0xf0] sm:$0xff] %vm1237, %v1235
  %1269 = vst.msk [vmem:[%s6 + $0xf8] sm:$0xff] %vm1237, %v1236
  // Predicated region
  $region26: #{net_forward.1} parent=0 // pred_check
    _
  $region27: #{net_forward.1} parent=0 // pred_check_branch
    %1271 = sbr.rel (0) target = $region29
  $region28: #{net_forward.1} parent=0 // pred_region
    _
  $region29: #{net_forward.1} parent=0 // pred_fallthru
    _
  // Predicated region
  $region30: #{net_forward.1} parent=0 // pred_check
    _
  $region31: #{net_forward.1} parent=0 // pred_check_branch
    %1273 = sbr.rel (0) target = $region33
  $region32: #{net_forward.1} parent=0 // pred_region
    _
  $region33: #{net_forward.1} parent=0 // pred_fallthru
    _

</llo_original>
